<compile_context>
chip_gen: v6e
topology: v6e:2x2x1
jax: 0.10.0
libtpu: 0.0.40
codegen_flags: <defaults>
</compile_context>

<pallas_src>
import jax
import jax.numpy as jnp
from jax.experimental import pallas as pl
from jax.experimental.pallas import tpu as pltpu


# ------------------------------ kernels ------------------------------------


def _swiglu_kernel_fullk(x_ref, w_ref, b_ref, o_ref):
    # x: (tm, K); w: (2, K, tn); b: (2, 1, tn); o: (tm, tn)
    x = x_ref[...]
    h = jnp.dot(x, w_ref[0, :, :], preferred_element_type=jnp.float32)
    g = jnp.dot(x, w_ref[1, :, :], preferred_element_type=jnp.float32)
    h = h + b_ref[0, :, :].astype(jnp.float32)
    g = g + b_ref[1, :, :].astype(jnp.float32)
    # jax.nn.sigmoid -> lax.logistic lowers to the EUP (tanh/exp) path on TPU,
    # so the epilogue hides under the next tile's matmuls.
    o_ref[...] = (h * (g * jax.nn.sigmoid(g))).astype(o_ref.dtype)


def _swiglu_kernel_tiled(x_ref, w_ref, b_ref, o_ref, acc_h, acc_g):
    # x: (tm, tk); w: (2, tk, tn); b: (2, 1, tn); o: (tm, tn); acc_*: (tm, tn) f32
    k = pl.program_id(2)

    @pl.when(k == 0)
    def _init():
        acc_h[...] = jnp.zeros_like(acc_h)
        acc_g[...] = jnp.zeros_like(acc_g)

    x = x_ref[...]
    acc_h[...] += jnp.dot(x, w_ref[0, :, :], preferred_element_type=jnp.float32)
    acc_g[...] += jnp.dot(x, w_ref[1, :, :], preferred_element_type=jnp.float32)

    @pl.when(k == pl.num_programs(2) - 1)
    def _finalize():
        h = acc_h[...] + b_ref[0, :, :].astype(jnp.float32)
        g = acc_g[...] + b_ref[1, :, :].astype(jnp.float32)
        o_ref[...] = (h * (g * jax.nn.sigmoid(g))).astype(o_ref.dtype)


# ------------------------------ helpers ------------------------------------


def _round_up(v, a):
    return ((v + a - 1) // a) * a


def _sublane_align(dtype):
    return {4: 8, 2: 16, 1: 32}.get(jnp.dtype(dtype).itemsize, 8)


def _divisor_tile(dim, target, align=128):
    """Largest multiple of `align` <= target that divides `dim`, else the full dim."""
    if dim <= target:
        return dim
    t = (target // align) * align
    while t >= align:
        if dim % t == 0:
            return t
        t -= align
    return dim


def _vmem_budget():
    phys = 64 * 1024 * 1024  # conservative fallback (v7x per-TC VMEM)
    try:
        info = pltpu.get_tpu_info()
        cap = getattr(info, "vmem_capacity_bytes", None)
        if cap:
            phys = int(cap)
    except Exception:
        pass
    # ~80% of physical: ~102 MiB on 128-MiB parts (v5e/v6e), ~51 MiB on 64-MiB v7x.
    # Leaves headroom for compiler-internal scratch / semaphores.
    return max(32 * 1024 * 1024, int(phys * 0.8))


def _choose_tiles(m, k_dim, nh, bpe, budget, align_m, tm_target, tn_target):
    """Pick (tm, tk, tn, use_acc). Prefers full-K; shrinks tm before tn before tk."""
    if m <= tm_target:
        tm0 = _round_up(max(m, 1), align_m)
    else:
        tm0 = max(align_m, (tm_target // align_m) * align_m)
    tn0 = _divisor_tile(nh, max(tn_target, 128), 128)

    def est(tm, tk, tn, use_acc):
        # double-buffered x + fused weight + bias + out (+ f32 accumulators)
        e = 2 * (tm * tk + 2 * tk * tn + 2 * tn + tm * tn) * bpe
        if use_acc:
            e += 2 * tm * tn * 4
        return e

    tm_opts = []
    for cand in (tm0, 256, 128):
        cand = max(align_m, (min(cand, tm0) // align_m) * align_m)
        if cand not in tm_opts:
            tm_opts.append(cand)
    tn_opts = []
    for cand in (tn0, _divisor_tile(nh, 256, 128), 128):
        cand = min(cand, tn0)
        if nh % cand == 0 and cand not in tn_opts:
            tn_opts.append(cand)

    # 1) Full-K (k_tiles == 1): no accumulator, no per-k re-DMA, fewer grid steps.
    for tn in tn_opts:
        for tm in tm_opts:
            if est(tm, k_dim, tn, False) <= budget:
                return tm, k_dim, tn, False

    if k_dim % 128 != 0:
        # TODO(synk): pad dim_in in prepare_swiglu_params() if a huge non-128-multiple
        # dim_in ever needs K tiling; in practice such dims are small and full-K fits.
        return tm_opts[-1], k_dim, tn_opts[-1], False

    # 2) Tiled-K fallback: modest tm/tn, largest 128-multiple divisor of K that fits.
    tm = tm_opts[-1]
    tn = tn_opts[-1]
    fixed = 2 * (2 * tn + tm * tn) * bpe + 2 * tm * tn * 4
    tk_max = max(128, (budget - fixed) // (2 * bpe * (tm + 2 * tn)))
    tk = _divisor_tile(k_dim, tk_max, 128)
    if tk > tk_max:
        tk = 128
    return tm, tk, tn, True


# --------------------------- parameter prep --------------------------------


def prepare_swiglu_params(weight, bias=None, dtype=None):
    """One-time conversion of PyTorch nn.Linear params. Do this OUTSIDE the hot path.

    weight: (2*dim_out, dim_in) [nn.Linear layout]; bias: (2*dim_out,) or None.
    Returns:
      w_stacked: (2, dim_in, dim_out_pad)  -- [0] = hidden half, [1] = gate half
      b_stacked: (2, 1, dim_out_pad)
      dim_out:   original (unpadded) output width.
    dim_out is padded to a multiple of 128 so every weight/output block is lane-dense.
    """
    two_dim_out, dim_in = weight.shape
    dim_out = two_dim_out // 2
    if dtype is None:
        dtype = weight.dtype
    nh = _round_up(dim_out, 128)
    pad = nh - dim_out

    w = jnp.asarray(weight, dtype=dtype)
    w_h = w[:dim_out, :].T
    w_g = w[dim_out:, :].T
    if pad:
        w_h = jnp.pad(w_h, ((0, 0), (0, pad)))
        w_g = jnp.pad(w_g, ((0, 0), (0, pad)))
    w_stacked = jnp.stack([w_h, w_g], axis=0)

    if bias is None:
        b_h = jnp.zeros((nh,), dtype=dtype)
        b_g = jnp.zeros((nh,), dtype=dtype)
    else:
        b = jnp.asarray(bias, dtype=dtype)
        b_h = jnp.pad(b[:dim_out], (0, pad))
        b_g = jnp.pad(b[dim_out:], (0, pad))
    b_stacked = jnp.stack([b_h, b_g], axis=0).reshape(2, 1, nh)
    return w_stacked, b_stacked, dim_out


# ------------------------------- wrapper ------------------------------------


def swiglu(x, w_stacked, b_stacked, dim_out=None, *, tm_target=256, tn_target=512):
    """SwiGLU forward: (x @ w_h + b_h) * SiLU(x @ w_g + b_g).

    x: (..., dim_in); w_stacked: (2, dim_in, dim_out_pad); b_stacked: (2, 1, dim_out_pad).
    """
    two, dim_in, nh = w_stacked.shape
    assert two == 2
    if dim_out is None:
        dim_out = nh
    *lead, k_dim = x.shape
    assert k_dim == dim_in

    x2d = x.reshape(-1, dim_in)
    m = x2d.shape[0]
    bpe = jnp.dtype(x.dtype).itemsize
    align_m = _sublane_align(x.dtype)
    budget = _vmem_budget()

    tm, tk, tn, tiled_k = _choose_tiles(m, dim_in, nh, bpe, budget, align_m,
                                        tm_target, tn_target)

    m_pad = _round_up(max(m, 1), tm)
    if m_pad != m:
        x2d = jnp.pad(x2d, ((0, m_pad - m), (0, 0)))

    m_tiles = m_pad // tm
    n_tiles = nh // tn

    # Grid order: keep the larger operand resident (streamed once across the sweep);
    # also avoid a size-1 leading parallel axis so both v7x TensorCores get work.
    x_bytes = m_pad * dim_in * bpe
    w_bytes = 2 * dim_in * nh * bpe
    if m_tiles == 1:
        m_outer = False
    elif n_tiles == 1:
        m_outer = True
    else:
        m_outer = x_bytes >= w_bytes

    if not tiled_k:
        if m_outer:
            grid = (m_tiles, n_tiles)
            x_map = lambda mi, n: (mi, 0)
            w_map = lambda mi, n: (0, 0, n)
            b_map = lambda mi, n: (0, 0, n)
            o_map = lambda mi, n: (mi, n)
        else:
            grid = (n_tiles, m_tiles)
            x_map = lambda n, mi: (mi, 0)
            w_map = lambda n, mi: (0, 0, n)
            b_map = lambda n, mi: (0, 0, n)
            o_map = lambda n, mi: (mi, n)
        kernel = _swiglu_kernel_fullk
        scratch = []
        dims = ("parallel", "parallel")
    else:
        k_tiles = dim_in // tk
        if m_outer:
            grid = (m_tiles, n_tiles, k_tiles)
            x_map = lambda mi, n, k: (mi, k)
            w_map = lambda mi, n, k: (0, k, n)
            b_map = lambda mi, n, k: (0, 0, n)
            o_map = lambda mi, n, k: (mi, n)
        else:
            grid = (n_tiles, m_tiles, k_tiles)
            x_map = lambda n, mi, k: (mi, k)
            w_map = lambda n, mi, k: (0, k, n)
            b_map = lambda n, mi, k: (0, 0, n)
            o_map = lambda n, mi, k: (mi, n)
        kernel = _swiglu_kernel_tiled
        scratch = [pltpu.VMEM((tm, tn), jnp.float32),   # hidden-half accumulator
                   pltpu.VMEM((tm, tn), jnp.float32)]   # gate-half accumulator
        dims = ("parallel", "parallel", "arbitrary")

    cost = pl.CostEstimate(
        flops=2 * m_pad * dim_in * (2 * nh),
        transcendentals=m_pad * nh,
        bytes_accessed=(m_pad * dim_in + 2 * dim_in * nh + 2 * nh + m_pad * nh) * bpe,
    )

    out = pl.pallas_call(
        kernel,
        out_shape=jax.ShapeDtypeStruct((m_pad, nh), x.dtype),
        grid_spec=pltpu.PrefetchScalarGridSpec(
            num_scalar_prefetch=0,
            grid=grid,
            in_specs=[
                pl.BlockSpec((tm, tk), x_map),        # x tile
                pl.BlockSpec((2, tk, tn), w_map),     # fused (hidden|gate) weight tile
                pl.BlockSpec((2, 1, tn), b_map),      # fused bias tile
            ],
            out_specs=pl.BlockSpec((tm, tn), o_map),
            scratch_shapes=scratch,
        ),
        compiler_params=pltpu.CompilerParams(
            dimension_semantics=dims,
            vmem_limit_bytes=budget,
        ),
        cost_estimate=cost,
    )(x2d, w_stacked, b_stacked)

    out = out[:m, :dim_out]
    return out.reshape(*lead, dim_out)


def swiglu_ref(x, weight, bias):
    """Pure-JAX reference matching the PyTorch module (PyTorch param layout)."""
    y = x @ weight.T + bias
    h, g = jnp.split(y, 2, axis=-1)
    return h * (g * jax.nn.sigmoid(g))


if __name__ == "__main__":
    key = jax.random.PRNGKey(0)
    batch, seq, dim_in, dim_out = 2, 8, 32, 32

    k_x, k_w, k_b = jax.random.split(key, 3)
    x = jax.random.normal(k_x, (batch, seq, dim_in), dtype=jnp.float32)
    # Deterministic PyTorch-style init: uniform(-1/sqrt(dim_in), 1/sqrt(dim_in)).
    bound = 1.0 / (dim_in ** 0.5)
    weight = jax.random.uniform(k_w, (2 * dim_out, dim_in),
                                minval=-bound, maxval=bound, dtype=jnp.float32)
    bias = jax.random.uniform(k_b, (2 * dim_out,),
                              minval=-bound, maxval=bound, dtype=jnp.float32)

    # One-time param prep (outside the hot path): transpose, pad to lane-dense, stack.
    w_s, b_s, d_out = prepare_swiglu_params(weight, bias)

    out = jax.block_until_ready(swiglu(x, w_s, b_s, d_out))
    ref = swiglu_ref(x, weight, bias)
    assert out.shape == (batch, seq, dim_out)
    assert jnp.allclose(out, ref, atol=1e-5, rtol=1e-5)
    print("KERNEL_OK")
</pallas_src>

<mosaic_0001>
module attributes {stable_mosaic.version = 11 : i64} {
  func.func @_swiglu_kernel_fullk(%arg0: i32, %arg1: i32, %arg2: memref<16x32xf32, #tpu.memory_space<vmem>>, %arg3: memref<2x32x128xf32, #tpu.memory_space<vmem>>, %arg4: memref<2x1x128xf32, #tpu.memory_space<vmem>>, %arg5: memref<16x128xf32, #tpu.memory_space<vmem>>) attributes {dimension_semantics = [#tpu.dimension_semantics<parallel>, #tpu.dimension_semantics<parallel>], iteration_bounds = array<i64: 1, 1>, scalar_prefetch = 0 : i64, scratch_operands = 0 : i64, tpu.core_type = #tpu.core_type<tc>, window_params = [{transform_indices = @transform_0, window_bounds = array<i64: 16, 32>}, {transform_indices = @transform_1, window_bounds = array<i64: 2, 32, 128>}, {transform_indices = @transform_2, window_bounds = array<i64: 2, 1, 128>}, {transform_indices = @transform_3, window_bounds = array<i64: 16, 128>}]} {
    %c0 = arith.constant 0 : index
    %c0_0 = arith.constant 0 : index
    %0 = vector.load %arg2[%c0, %c0_0] : memref<16x32xf32, #tpu.memory_space<vmem>>, vector<16x32xf32>
    %c0_1 = arith.constant 0 : index
    %c0_2 = arith.constant 0 : index
    %c0_3 = arith.constant 0 : index
    %1 = vector.load %arg3[%c0_1, %c0_2, %c0_3] : memref<2x32x128xf32, #tpu.memory_space<vmem>>, vector<1x32x128xf32>
    %2 = vector.shape_cast %1 : vector<1x32x128xf32> to vector<32x128xf32>
    %cst = arith.constant dense<0.000000e+00> : vector<16x128xf32>
    %3 = tpu.matmul %0, %2, %cst {dimension_numbers = #tpu.dot_dimension_numbers<[1], [0], [0], [1], [0, 0, 1, 1], [], []>} : vector<16x32xf32>, vector<32x128xf32>, vector<16x128xf32> -> vector<16x128xf32>
    %c1 = arith.constant 1 : index
    %c0_4 = arith.constant 0 : index
    %c0_5 = arith.constant 0 : index
    %4 = vector.load %arg3[%c1, %c0_4, %c0_5] : memref<2x32x128xf32, #tpu.memory_space<vmem>>, vector<1x32x128xf32>
    %5 = vector.shape_cast %4 : vector<1x32x128xf32> to vector<32x128xf32>
    %cst_6 = arith.constant dense<0.000000e+00> : vector<16x128xf32>
    %6 = tpu.matmul %0, %5, %cst_6 {dimension_numbers = #tpu.dot_dimension_numbers<[1], [0], [0], [1], [0, 0, 1, 1], [], []>} : vector<16x32xf32>, vector<32x128xf32>, vector<16x128xf32> -> vector<16x128xf32>
    %c0_7 = arith.constant 0 : index
    %c0_8 = arith.constant 0 : index
    %c0_9 = arith.constant 0 : index
    %7 = vector.load %arg4[%c0_7, %c0_8, %c0_9] : memref<2x1x128xf32, #tpu.memory_space<vmem>>, vector<1x1x128xf32>
    %8 = vector.shape_cast %7 : vector<1x1x128xf32> to vector<1x128xf32>
    %9 = vector.broadcast %8 : vector<1x128xf32> to vector<16x128xf32>
    %10 = arith.addf %3, %9 : vector<16x128xf32>
    %c1_10 = arith.constant 1 : index
    %c0_11 = arith.constant 0 : index
    %c0_12 = arith.constant 0 : index
    %11 = vector.load %arg4[%c1_10, %c0_11, %c0_12] : memref<2x1x128xf32, #tpu.memory_space<vmem>>, vector<1x1x128xf32>
    %12 = vector.shape_cast %11 : vector<1x1x128xf32> to vector<1x128xf32>
    %13 = vector.broadcast %12 : vector<1x128xf32> to vector<16x128xf32>
    %14 = arith.addf %6, %13 : vector<16x128xf32>
    %15 = arith.negf %14 : vector<16x128xf32>
    %16 = math.exp %15 : vector<16x128xf32>
    %cst_13 = arith.constant 1.000000e+00 : f32
    %17 = vector.broadcast %cst_13 : f32 to vector<16x128xf32>
    %18 = arith.addf %17, %16 : vector<16x128xf32>
    %19 = arith.divf %17, %18 : vector<16x128xf32>
    %20 = arith.mulf %14, %19 : vector<16x128xf32>
    %21 = arith.mulf %10, %20 : vector<16x128xf32>
    %c0_14 = arith.constant 0 : index
    %c0_15 = arith.constant 0 : index
    %22 = vector.load %arg5[%c0_14, %c0_15] : memref<16x128xf32, #tpu.memory_space<vmem>>, vector<16x128xf32>
    tpu.vector_store %arg5[%c0_14, %c0_15], %21 {strides = array<i32>} : memref<16x128xf32, #tpu.memory_space<vmem>>, vector<16x128xf32>,
    return
  }
  func.func @transform_0(%arg0: i32, %arg1: i32) -> (i32, i32) {
    %c0_i32 = arith.constant 0 : i32
    %c0_i32_0 = arith.constant 0 : i32
    return %arg1, %c0_i32 : i32, i32
  }
  func.func @transform_1(%arg0: i32, %arg1: i32) -> (i32, i32, i32) {
    %c0_i32 = arith.constant 0 : i32
    %c0_i32_0 = arith.constant 0 : i32
    %c0_i32_1 = arith.constant 0 : i32
    return %c0_i32, %c0_i32_0, %arg0 : i32, i32, i32
  }
  func.func @transform_2(%arg0: i32, %arg1: i32) -> (i32, i32, i32) {
    %c0_i32 = arith.constant 0 : i32
    %c0_i32_0 = arith.constant 0 : i32
    %c0_i32_1 = arith.constant 0 : i32
    return %c0_i32, %c0_i32_0, %arg0 : i32, i32, i32
  }
  func.func @transform_3(%arg0: i32, %arg1: i32) -> (i32, i32) {
    %c0_i32 = arith.constant 0 : i32
    return %arg1, %arg0 : i32, i32
  }
}

</mosaic_0001>

<llo_original>
// kernel: tpu_custom_call.1
$region0: #{tpu_custom_call.1}
  #allocation0 [shape = 'u32[]', space=smem, size = 0x4, offset = 0x4, fixed_abs, tag = 'smem constant byte address 0x4 - core index']
  #allocation1 [shape = 'u32[144,128]{1,0:T(1,128)}', space=vmem, size = 0x12000, scoped, tag = 'internal scratch']
  %s0 = inlined_call_operand.hbm [shape: f32[16,32], index: 0, kind: input, shape index: {}]
  %s1 = inlined_call_operand.hbm [shape: f32[2,32,128], index: 1, kind: input, shape index: {}]
  %s2 = inlined_call_operand.vmem [shape: f32[2,1,128], index: 2, kind: input, shape index: {}]
  %s3 = inlined_call_operand.hbm [shape: f32[16,128], index: 3, kind: output, shape index: {}]
  %s4 = sld [smem:[#allocation0]]
  $region30: #{tpu_custom_call.1} parent=0
    _
  %s6 = ssub.s32 1, %s4
  %s7 = scalar_select 0, %s6, %s4
  $region1: #{tpu_custom_call.1} parent=0
    #allocation2 [shape = 'u8[8192]{0}', space=vmem, size = 0x2000, scoped, tag = 'input window, operand 0, single buffered']
    #allocation3 [shape = 's32[1]{0}', space=sflag, size = 0x4, scoped, tag = 'scoped memory for tpu_custom_call.1']
    #allocation4 [shape = 's32[1]{0}', space=sflag, size = 0x4, scoped, tag = 'scoped memory for tpu_custom_call.1']
    #allocation5 [shape = 'u8[32768]{0}', space=vmem, size = 0x8000, scoped, tag = 'input window, operand 1, single buffered']
    #allocation6 [shape = 's32[1]{0}', space=sflag, size = 0x4, scoped, tag = 'scoped memory for tpu_custom_call.1']
    #allocation7 [shape = 'u8[8192]{0}', space=vmem, size = 0x2000, scoped, tag = 'output window, operand 0, single buffered']
    %8 = vsyncpa [#allocation3], 0
    %9 = vsyncpa [#allocation6], 0
    %10 = vsyncpa [#allocation4], 0
    // Predicated region
    $region2: #{tpu_custom_call.1} parent=1 // pred_check
      _
    $region3: #{tpu_custom_call.1} parent=1 // pred_check_branch
      %12 = sbr.rel (0) target = $region5
    $region4: #{tpu_custom_call.1} parent=1 // pred_region
      %s14 = ssub.s32 256, 256
      %15 = vsyncadd [#allocation3], %s14
      %s16 = sshll.u32 [#allocation2], 4
      %s17 = int_to_ptr.vmem [resolvable:$true] %s16
      %22 = dma.hbm_to_vmem [thread:$0]  %s0, 256, %s17, [#allocation3], 128, 128, 8
    $region5: #{tpu_custom_call.1} parent=1 // pred_fallthru
      _
    // Predicated region
    $region6: #{tpu_custom_call.1} parent=1 // pred_check
      _
    $region7: #{tpu_custom_call.1} parent=1 // pred_check_branch
      %24 = sbr.rel (0) target = $region9
    $region8: #{tpu_custom_call.1} parent=1 // pred_region
      %s26 = ssub.s32 1024, 1024
      %27 = vsyncadd [#allocation6], %s26
      %s28 = sshll.u32 [#allocation5], 4
      %s29 = int_to_ptr.vmem [resolvable:$true] %s28
      %34 = dma.hbm_to_vmem [thread:$0]  %s1, 1024, %s29, [#allocation6], 128, 128, 8
    $region9: #{tpu_custom_call.1} parent=1 // pred_fallthru
      _
    // Predicated region
    $region10: #{tpu_custom_call.1} parent=1 // pred_check
      _
    $region11: #{tpu_custom_call.1} parent=1 // pred_check_branch
      %36 = sbr.rel (0) target = $region13
    $region12: #{tpu_custom_call.1} parent=1 // pred_region
      _
    $region13: #{tpu_custom_call.1} parent=1 // pred_fallthru
      _
    // Predicated region
    $region14: #{tpu_custom_call.1} parent=1 // pred_check
      _
    $region15: #{tpu_custom_call.1} parent=1 // pred_check_branch
      %38 = sbr.rel (0) target = $region17
    $region16: #{tpu_custom_call.1} parent=1 // pred_region
      %39 = dma.done [#allocation3], 256
    $region17: #{tpu_custom_call.1} parent=1 // pred_fallthru
      _
    // Predicated region
    $region18: #{tpu_custom_call.1} parent=1 // pred_check
      _
    $region19: #{tpu_custom_call.1} parent=1 // pred_check_branch
      %41 = sbr.rel (0) target = $region21
    $region20: #{tpu_custom_call.1} parent=1 // pred_region
      %42 = dma.done [#allocation6], 1024
    $region21: #{tpu_custom_call.1} parent=1 // pred_fallthru
      _
    %v43 = vld [vmem:[#allocation2] sm:$0xff]
    %v44 = vld [vmem:[#allocation2 + $0x8] sm:$0xff]
    %v45 = vld [vmem:[#allocation5] sm:$0xff]
    %v46 = vld [vmem:[#allocation5 + $0x8] sm:$0xff]
    %v47 = vld [vmem:[#allocation5 + $0x10] sm:$0xff]
    %v48 = vld [vmem:[#allocation5 + $0x18] sm:$0xff]
    %s49 = scalar_lea.vmem [#allocation5], 32
    %v50 = vld [vmem:[%s49] sm:$0xff]
    %v51 = vld [vmem:[%s49 + $0x8] sm:$0xff]
    %v52 = vld [vmem:[%s49 + $0x10] sm:$0xff]
    %v53 = vld [vmem:[%s49 + $0x18] sm:$0xff]
    %v54 = vld [vmem:[%s2] sm:$0x1]
    %v56 = vlaneseq
    %v57 = vshrl.u32 %v56, 7
    %v58 = vsub.s32 0, %v57
    %v59 = vrot.slane %v54, %v58
    %vm61 = vcmask 261120
    %v63 = vsel %vm61, %v43, 0
    %v66 = vsel %vm61, %v44, 0
    %68 = vmatprep.subr.mxu0 0.0
    %69 = vmatpush1.msra.mxu0 0.0
    %70 = vmatprep.subr.mxu0 0.0
    %71 = vmatpush1.msra.mxu0 0.0
    %72 = vmatprep.subr.mxu0 0.0
    %73 = vmatpush1.msra.mxu0 0.0
    %74 = vmatprep.subr.mxu0 0.0
    %75 = vmatpush1.msra.mxu0 0.0
    %76 = vmatprep.subr.mxu0 0.0
    %77 = vmatpush1.msra.mxu0 0.0
    %78 = vmatprep.subr.mxu0 0.0
    %79 = vmatpush1.msra.mxu0 0.0
    %80 = vmatprep.subr.mxu0 0.0
    %81 = vmatpush1.msra.mxu0 0.0
    %82 = vmatprep.subr.mxu0 0.0
    %83 = vmatpush1.msra.mxu0 0.0
    %84 = vmatprep.subr.mxu0 0.0
    %85 = vmatpush1.msra.mxu0 0.0
    %86 = vmatprep.subr.mxu0 0.0
    %87 = vmatpush1.msra.mxu0 0.0
    %88 = vmatprep.subr.mxu0 0.0
    %89 = vmatpush1.msra.mxu0 0.0
    %90 = vmatprep.subr.mxu0 0.0
    %91 = vmatpush1.msra.mxu0 0.0
    %92 = vmatprep.subr.mxu0 0.0
    %93 = vmatpush1.msra.mxu0 %v48
    %94 = vmatprep.subr.mxu0 0.0
    %95 = vmatpush1.msra.mxu0 %v47
    %96 = vmatprep.subr.mxu0 0.0
    %97 = vmatpush1.msra.mxu0 %v46
    %98 = vmatprep.subr.mxu0 0.0
    %99 = vmatpush1.msra.mxu0 %v45
    %100 = vmatprep.subr.mxu0 0.0
    %101 = vmatpush2.msra.mxu0 0.0
    %102 = vmatprep.subr.mxu0 0.0
    %103 = vmatpush2.msra.mxu0 0.0
    %104 = vmatprep.subr.mxu0 0.0
    %105 = vmatpush2.msra.mxu0 0.0
    %106 = vmatprep.subr.mxu0 0.0
    %107 = vmatpush2.msra.mxu0 0.0
    %108 = vmatprep.subr.mxu0 0.0
    %109 = vmatpush2.msra.mxu0 0.0
    %110 = vmatprep.subr.mxu0 0.0
    %111 = vmatpush2.msra.mxu0 0.0
    %112 = vmatprep.subr.mxu0 0.0
    %113 = vmatpush2.msra.mxu0 0.0
    %114 = vmatprep.subr.mxu0 0.0
    %115 = vmatpush2.msra.mxu0 0.0
    %116 = vmatprep.subr.mxu0 0.0
    %117 = vmatpush2.msra.mxu0 0.0
    %118 = vmatprep.subr.mxu0 0.0
    %119 = vmatpush2.msra.mxu0 0.0
    %120 = vmatprep.subr.mxu0 0.0
    %121 = vmatpush2.msra.mxu0 0.0
    %122 = vmatprep.subr.mxu0 0.0
    %123 = vmatpush2.msra.mxu0 0.0
    %124 = vmatprep.subr.mxu0 0.0
    %125 = vmatpush2.msra.mxu0 0.0
    %126 = vmatprep.subr.mxu0 0.0
    %127 = vmatpush2.msra.mxu0 0.0
    %128 = vmatprep.subr.mxu0 0.0
    %129 = vmatpush2.msra.mxu0 0.0
    %130 = vmatprep.subr.mxu0 0.0
    %131 = vmatpush2.msra.mxu0 0.0
    %132 = vmatprep.mubr.f32.mxu0 0.0
    %133 = vmatmul.mubr.f32.gmra.mxu0 %v63
    %v134 = vpop.f32.mrf.mxu0
    %v135 = vadd.f32 %v59, %v134
    %v136 = vpop.f32.mrf.mxu0
    %137 = vmatprep.mubr.f32.mxu0 0.0
    %138 = vmatmul.mubr.f32.gmra.mxu0 %v66
    %v139 = vpop.f32.mrf.mxu0
    %v140 = vadd.f32 %v59, %v139
    %v141 = vpop.f32.mrf.mxu0
    %142 = vdwg.mxu0
    %s143 = scalar_lea.vmem %s2, 1
    %v144 = vld [vmem:[%s143] sm:$0x1]
    %v146 = vlaneseq
    %v147 = vshrl.u32 %v146, 7
    %v148 = vsub.s32 0, %v147
    %v149 = vrot.slane %v144, %v148
    %151 = vmatprep.subr.mxu0 0.0
    %152 = vmatpush1.msra.mxu0 0.0
    %153 = vmatprep.subr.mxu0 0.0
    %154 = vmatpush1.msra.mxu0 0.0
    %155 = vmatprep.subr.mxu0 0.0
    %156 = vmatpush1.msra.mxu0 0.0
    %157 = vmatprep.subr.mxu0 0.0
    %158 = vmatpush1.msra.mxu0 0.0
    %159 = vmatprep.subr.mxu0 0.0
    %160 = vmatpush1.msra.mxu0 0.0
    %161 = vmatprep.subr.mxu0 0.0
    %162 = vmatpush1.msra.mxu0 0.0
    %163 = vmatprep.subr.mxu0 0.0
    %164 = vmatpush1.msra.mxu0 0.0
    %165 = vmatprep.subr.mxu0 0.0
    %166 = vmatpush1.msra.mxu0 0.0
    %167 = vmatprep.subr.mxu0 0.0
    %168 = vmatpush1.msra.mxu0 0.0
    %169 = vmatprep.subr.mxu0 0.0
    %170 = vmatpush1.msra.mxu0 0.0
    %171 = vmatprep.subr.mxu0 0.0
    %172 = vmatpush1.msra.mxu0 0.0
    %173 = vmatprep.subr.mxu0 0.0
    %174 = vmatpush1.msra.mxu0 0.0
    %175 = vmatprep.subr.mxu0 0.0
    %176 = vmatpush1.msra.mxu0 %v53
    %177 = vmatprep.subr.mxu0 0.0
    %178 = vmatpush1.msra.mxu0 %v52
    %179 = vmatprep.subr.mxu0 0.0
    %180 = vmatpush1.msra.mxu0 %v51
    %181 = vmatprep.subr.mxu0 0.0
    %182 = vmatpush1.msra.mxu0 %v50
    %183 = vmatprep.subr.mxu0 0.0
    %184 = vmatpush2.msra.mxu0 0.0
    %185 = vmatprep.subr.mxu0 0.0
    %186 = vmatpush2.msra.mxu0 0.0
    %187 = vmatprep.subr.mxu0 0.0
    %188 = vmatpush2.msra.mxu0 0.0
    %189 = vmatprep.subr.mxu0 0.0
    %190 = vmatpush2.msra.mxu0 0.0
    %191 = vmatprep.subr.mxu0 0.0
    %192 = vmatpush2.msra.mxu0 0.0
    %193 = vmatprep.subr.mxu0 0.0
    %194 = vmatpush2.msra.mxu0 0.0
    %195 = vmatprep.subr.mxu0 0.0
    %196 = vmatpush2.msra.mxu0 0.0
    %197 = vmatprep.subr.mxu0 0.0
    %198 = vmatpush2.msra.mxu0 0.0
    %199 = vmatprep.subr.mxu0 0.0
    %200 = vmatpush2.msra.mxu0 0.0
    %201 = vmatprep.subr.mxu0 0.0
    %202 = vmatpush2.msra.mxu0 0.0
    %203 = vmatprep.subr.mxu0 0.0
    %204 = vmatpush2.msra.mxu0 0.0
    %205 = vmatprep.subr.mxu0 0.0
    %206 = vmatpush2.msra.mxu0 0.0
    %207 = vmatprep.subr.mxu0 0.0
    %208 = vmatpush2.msra.mxu0 0.0
    %209 = vmatprep.subr.mxu0 0.0
    %210 = vmatpush2.msra.mxu0 0.0
    %211 = vmatprep.subr.mxu0 0.0
    %212 = vmatpush2.msra.mxu0 0.0
    %213 = vmatprep.subr.mxu0 0.0
    %214 = vmatpush2.msra.mxu0 0.0
    %215 = vmatprep.mubr.f32.mxu0 0.0
    %216 = vmatmul.mubr.f32.gmra.mxu0 %v63
    %v217 = vpop.f32.mrf.mxu0
    %v218 = vadd.f32 %v149, %v217
    %v219 = vpop.f32.mrf.mxu0
    %220 = vmatprep.mubr.f32.mxu0 0.0
    %221 = vmatmul.mubr.f32.gmra.mxu0 %v66
    %v222 = vpop.f32.mrf.mxu0
    %v223 = vadd.f32 %v149, %v222
    %v224 = vpop.f32.mrf.mxu0
    %225 = vdwg.mxu0
    %v226 = vxor.u32 %v218, 2147483648
    %v227 = vxor.u32 %v223, 2147483648
    %v228 = vmul.f32 %v226, 1.442695
    %v229 = vpow.pop %v228
    %v230 = vmul.f32 %v227, 1.442695
    %v231 = vpow.pop %v230
    %v232 = vadd.f32 %v229, 1.0
    %v233 = vadd.f32 %v231, 1.0
    %v234 = vrcp.pop %v232
    %v235 = vmul.f32 1.0, %v234
    %v236 = vrcp.pop %v233
    %v237 = vmul.f32 1.0, %v236
    %v238 = vmul.f32 %v218, %v235
    %v239 = vmul.f32 %v223, %v237
    %v240 = vmul.f32 %v135, %v238
    %v241 = vmul.f32 %v140, %v239
    %242 = vst [vmem:[#allocation7] sm:$0xff] %v240
    %243 = vst [vmem:[#allocation7 + $0x8] sm:$0xff] %v241
    // Predicated region
    $region22: #{tpu_custom_call.1} parent=1 // pred_check
      _
    $region23: #{tpu_custom_call.1} parent=1 // pred_check_branch
      %245 = sbr.rel (0) target = $region25
    $region24: #{tpu_custom_call.1} parent=1 // pred_region
      %s247 = ssub.s32 256, 256
      %248 = vsyncadd [#allocation4], %s247
      %s249 = sshll.u32 [#allocation7], 4
      %s250 = int_to_ptr.vmem [resolvable:$true] %s249
      %255 = dma.vmem_to_hbm [thread:$0]  %s250, 256, %s3, [#allocation4], 128, 128, 8
    $region25: #{tpu_custom_call.1} parent=1 // pred_fallthru
      _
    // Predicated region
    $region26: #{tpu_custom_call.1} parent=1 // pred_check
      _
    $region27: #{tpu_custom_call.1} parent=1 // pred_check_branch
      %257 = sbr.rel (0) target = $region29
    $region28: #{tpu_custom_call.1} parent=1 // pred_region
      %258 = dma.done [#allocation4], 256
    $region29: #{tpu_custom_call.1} parent=1 // pred_fallthru
      _
    %259 = vsyncpa [#allocation3], 1
    %260 = vsyncpa [#allocation6], 1
    %261 = vsyncpa [#allocation4], 1

</llo_original>
